<compile_context>
chip_gen: v5e
topology: v5e:2x2
jax: 0.10.0
libtpu: 0.0.40
codegen_flags: <defaults>
</compile_context>

<pallas_src>
import jax
import jax.numpy as jnp
from jax import lax
from jax.experimental import pallas as pl
from jax.experimental.pallas import tpu as pltpu

_LANE = 128
_CHUNK = 1024  # lanes per inner compute chunk (keeps live vregs small)


def _edge_feat_kernel(p_ref, x1_ref, x2_ref, o_ref):
    """Folded conv1+conv2+concat+merge over one (batch, pixel-tile) block.

    p_ref  : (Cin, 3)     col 0 = v1 = merge_w[:, :C] @ conv1_w
                          col 1 = v2 = merge_w[:, C:] @ conv2_w
                          col 2 row 0 = fused bias (rest zero)
    x1_ref : (1, Cin, TP) pixel tile: channels in sublanes, pixels in lanes
    x2_ref : (1, Cin, TP)
    o_ref  : (1, 1, TP)   single-output-channel tile (lane-dense)
    """
    p = p_ref[...].astype(jnp.float32)          # (Cin, 3), VMEM-resident
    v1 = p[:, 0:1]                              # (Cin, 1) -> lane-broadcast
    v2 = p[:, 1:2]
    b = p[0:1, 2:3]                             # (1, 1)

    tp = x1_ref.shape[-1]
    ch = min(_CHUNK, tp)

    def compute(c0, width):
        x1c = x1_ref[0, :, pl.ds(c0, width)].astype(jnp.float32)   # (Cin, width)
        x2c = x2_ref[0, :, pl.ds(c0, width)].astype(jnp.float32)
        s = v1 * x1c + v2 * x2c                                    # VPU FMAs
        out = jnp.sum(s, axis=0, keepdims=True) + b                # (1, width)
        o_ref[0, :, pl.ds(c0, width)] = out.astype(o_ref.dtype)

    n_full = tp // ch

    def body(i, carry):
        compute(pl.multiple_of(i * ch, ch), ch)
        return carry

    lax.fori_loop(0, n_full, body, 0)

    rem = tp - n_full * ch                      # static, multiple of 128
    if rem:
        compute(n_full * ch, rem)


def edge_featlayer2_forward(x1, x2, w1, b1, w2, b2, wm, bm, *, tp_max=65536):
    """Edge_featlayer_2.forward.

    x1, x2 : (N, Cin, H, W)   NCHW (PyTorch convention)
    w1, w2 : (C, Cin, 1, 1)   nn.Conv2d(in_channel, channel, 1, 1) weights
    b1, b2 : (C,)
    wm     : (1, 2*C, 1, 1)   nn.Conv2d(2*channel, 1, 1) weight
    bm     : (1,)
    returns: (N, 1, H, W)     NCHW
    """
    N, Cin, H, W = x1.shape
    C = w1.shape[0]
    HW = H * W
    f32 = jnp.float32

    # ---- exact algebraic fold of the three 1x1 convs (done once, tiny) -----------
    #   out = m1 @ (W1 x1 + b1) + m2 @ (W2 x2 + b2) + bm
    #       = (m1 @ W1) x1 + (m2 @ W2) x2 + (m1 @ b1 + m2 @ b2 + bm)
    w1m = w1.reshape(C, Cin).astype(f32)
    w2m = w2.reshape(C, Cin).astype(f32)
    wmf = wm.reshape(1, 2 * C).astype(f32)
    m1, m2 = wmf[:, :C], wmf[:, C:]
    v1 = (m1 @ w1m)[0]                                             # (Cin,)
    v2 = (m2 @ w2m)[0]
    b_eff = ((m1 @ b1.astype(f32).reshape(C, 1))[0, 0]
             + (m2 @ b2.astype(f32).reshape(C, 1))[0, 0]
             + bm.astype(f32).reshape(()))
    bcol = jnp.zeros((Cin,), f32).at[0].set(b_eff)
    params = jnp.stack([v1, v2, bcol], axis=1)                     # (Cin, 3)

    # ---- layout glue (NCHW preserved, no transposes, no jnp.pad) -----------------
    x1f = x1.reshape(N, Cin, HW)
    x2f = x2.reshape(N, Cin, HW)

    # Largest lane-aligned pixel tile <= tp_max that minimizes wasted lanes.
    lanes = -(-HW // _LANE)                                        # 128-lane groups
    nsteps = -(-lanes // max(tp_max // _LANE, 1))
    tp = _LANE * (-(-lanes // nsteps))                             # multiple of 128
    n_ptiles = -(-HW // tp)                                        # ragged tail -> masked

    grid = (N, n_ptiles)

    out = pl.pallas_call(
        _edge_feat_kernel,
        out_shape=jax.ShapeDtypeStruct((N, 1, HW), x1.dtype),
        grid_spec=pltpu.PrefetchScalarGridSpec(
            num_scalar_prefetch=0,
            grid=grid,
            in_specs=[
                pl.BlockSpec((Cin, 3), lambda n, p: (0, 0)),        # folded params
                pl.BlockSpec((1, Cin, tp), lambda n, p: (n, 0, p)),  # x1 tile
                pl.BlockSpec((1, Cin, tp), lambda n, p: (n, 0, p)),  # x2 tile
            ],
            out_specs=pl.BlockSpec((1, 1, tp), lambda n, p: (n, 0, p)),
        ),
        compiler_params=pltpu.CompilerParams(
            dimension_semantics=("parallel", "parallel"),
            vmem_limit_bytes=32 * 1024 * 1024),
    )(params, x1f, x2f)

    return out.reshape(N, 1, H, W)


if __name__ == "__main__":
    key = jax.random.PRNGKey(0)
    k = jax.random.split(key, 8)

    N, Cin, C, H, W = 2, 4, 8, 16, 16
    x1 = jax.random.normal(k[0], (N, Cin, H, W), jnp.float32)
    x2 = jax.random.normal(k[1], (N, Cin, H, W), jnp.float32)

    # deterministic PyTorch-style uniform init for the 1x1 conv params
    bound1 = 1.0 / float(Cin) ** 0.5
    w1 = jax.random.uniform(k[2], (C, Cin, 1, 1), jnp.float32, -bound1, bound1)
    b1 = jax.random.uniform(k[3], (C,), jnp.float32, -bound1, bound1)
    w2 = jax.random.uniform(k[4], (C, Cin, 1, 1), jnp.float32, -bound1, bound1)
    b2 = jax.random.uniform(k[5], (C,), jnp.float32, -bound1, bound1)
    boundm = 1.0 / float(2 * C) ** 0.5
    wm = jax.random.uniform(k[6], (1, 2 * C, 1, 1), jnp.float32, -boundm, boundm)
    bm = jax.random.uniform(k[7], (1,), jnp.float32, -boundm, boundm)

    out = jax.block_until_ready(
        edge_featlayer2_forward(x1, x2, w1, b1, w2, b2, wm, bm))
    assert out.shape == (N, 1, H, W)

    # plain-JAX reference (same math as the PyTorch module, independent lowering)
    y1 = jnp.einsum('oc,nchw->nohw', w1[:, :, 0, 0], x1) + b1[None, :, None, None]
    y2 = jnp.einsum('oc,nchw->nohw', w2[:, :, 0, 0], x2) + b2[None, :, None, None]
    cat = jnp.concatenate([y1, y2], axis=1)
    ref = jnp.einsum('oc,nchw->nohw', wm[:, :, 0, 0], cat) + bm[None, :, None, None]

    err = float(jnp.max(jnp.abs(out - ref)))
    scale = float(jnp.max(jnp.abs(ref))) + 1e-6
    assert err <= 1e-3 * scale + 1e-4, f"kernel mismatch vs reference: {err}"
    print("KERNEL_OK")
</pallas_src>

<mosaic_0001>
module attributes {stable_mosaic.version = 11 : i64} {
  func.func @_edge_feat_kernel(%arg0: i32, %arg1: i32, %arg2: memref<4x3xf32, #tpu.memory_space<vmem>>, %arg3: memref<1x4x256xf32, #tpu.memory_space<vmem>>, %arg4: memref<1x4x256xf32, #tpu.memory_space<vmem>>, %arg5: memref<1x1x256xf32, #tpu.memory_space<vmem>>) attributes {dimension_semantics = [#tpu.dimension_semantics<parallel>, #tpu.dimension_semantics<parallel>], iteration_bounds = array<i64: 2, 1>, scalar_prefetch = 0 : i64, scratch_operands = 0 : i64, tpu.core_type = #tpu.core_type<tc>, window_params = [{pipeline_mode = #tpu.pipeline_mode<synchronous>, transform_indices = @transform_0, window_bounds = array<i64: 4, 3>}, {transform_indices = @transform_1, window_bounds = array<i64: 1, 4, 256>}, {transform_indices = @transform_2, window_bounds = array<i64: 1, 4, 256>}, {transform_indices = @transform_3, window_bounds = array<i64: 1, 1, 256>}]} {
    %c0 = arith.constant 0 : index
    %c0_0 = arith.constant 0 : index
    %0 = vector.load %arg2[%c0, %c0_0] : memref<4x3xf32, #tpu.memory_space<vmem>>, vector<4x3xf32>
    %1 = vector.extract_strided_slice %0 {offsets = [0, 0], sizes = [4, 1], strides = [1, 1]} : vector<4x3xf32> to vector<4x1xf32>
    %2 = vector.extract_strided_slice %0 {offsets = [0, 1], sizes = [4, 1], strides = [1, 1]} : vector<4x3xf32> to vector<4x1xf32>
    %3 = vector.extract_strided_slice %0 {offsets = [0, 2], sizes = [1, 1], strides = [1, 1]} : vector<4x3xf32> to vector<1x1xf32>
    %c0_i32 = arith.constant 0 : i32
    %c256_i32 = arith.constant 256 : i32
    %4 = arith.muli %c0_i32, %c256_i32 : i32
    %5 = tpu.assume_multiple %4, 256 : i32
    %c0_1 = arith.constant 0 : index
    %c0_2 = arith.constant 0 : index
    %6 = arith.index_cast %5 : i32 to index
    %7 = vector.load %arg3[%c0_1, %c0_2, %6] : memref<1x4x256xf32, #tpu.memory_space<vmem>>, vector<1x4x256xf32>
    %8 = vector.shape_cast %7 : vector<1x4x256xf32> to vector<4x256xf32>
    %c0_3 = arith.constant 0 : index
    %c0_4 = arith.constant 0 : index
    %9 = arith.index_cast %5 : i32 to index
    %10 = vector.load %arg4[%c0_3, %c0_4, %9] : memref<1x4x256xf32, #tpu.memory_space<vmem>>, vector<1x4x256xf32>
    %11 = vector.shape_cast %10 : vector<1x4x256xf32> to vector<4x256xf32>
    %12 = vector.broadcast %1 : vector<4x1xf32> to vector<4x256xf32>
    %13 = arith.mulf %12, %8 : vector<4x256xf32>
    %14 = vector.broadcast %2 : vector<4x1xf32> to vector<4x256xf32>
    %15 = arith.mulf %14, %11 : vector<4x256xf32>
    %16 = arith.addf %13, %15 : vector<4x256xf32>
    %cst = arith.constant dense<0.000000e+00> : vector<256xf32>
    %17 = vector.multi_reduction <add>, %16, %cst [0] : vector<4x256xf32> to vector<256xf32>
    %18 = vector.shape_cast %17 : vector<256xf32> to vector<1x256xf32>
    %19 = vector.broadcast %3 : vector<1x1xf32> to vector<1x256xf32>
    %20 = arith.addf %18, %19 : vector<1x256xf32>
    %c0_5 = arith.constant 0 : index
    %c0_6 = arith.constant 0 : index
    %21 = arith.index_cast %5 : i32 to index
    %22 = vector.load %arg5[%c0_5, %c0_6, %21] : memref<1x1x256xf32, #tpu.memory_space<vmem>>, vector<1x1x256xf32>
    %23 = vector.shape_cast %22 : vector<1x1x256xf32> to vector<1x256xf32>
    %24 = vector.shape_cast %20 : vector<1x256xf32> to vector<1x1x256xf32>
    tpu.vector_store %arg5[%c0_5, %c0_6, %21], %24 {strides = array<i32>} : memref<1x1x256xf32, #tpu.memory_space<vmem>>, vector<1x1x256xf32>,
    %c1_i32 = arith.constant 1 : i32
    return
  }
  func.func @transform_0(%arg0: i32, %arg1: i32) -> (i32, i32) {
    %c0_i32 = arith.constant 0 : i32
    %c0_i32_0 = arith.constant 0 : i32
    %c0_i32_1 = arith.constant 0 : i32
    return %c0_i32, %c0_i32_0 : i32, i32
  }
  func.func @transform_1(%arg0: i32, %arg1: i32) -> (i32, i32, i32) {
    %c0_i32 = arith.constant 0 : i32
    %c0_i32_0 = arith.constant 0 : i32
    return %arg0, %c0_i32, %arg1 : i32, i32, i32
  }
  func.func @transform_2(%arg0: i32, %arg1: i32) -> (i32, i32, i32) {
    %c0_i32 = arith.constant 0 : i32
    %c0_i32_0 = arith.constant 0 : i32
    return %arg0, %c0_i32, %arg1 : i32, i32, i32
  }
  func.func @transform_3(%arg0: i32, %arg1: i32) -> (i32, i32, i32) {
    %c0_i32 = arith.constant 0 : i32
    %c0_i32_0 = arith.constant 0 : i32
    return %arg0, %c0_i32, %arg1 : i32, i32, i32
  }
}

</mosaic_0001>

<llo_original>
// kernel: tpu_custom_call.1
$region0: #{tpu_custom_call.1}
  #allocation0 [shape = 'u32[]', space=smem, size = 0x4, offset = 0x4, fixed_abs, tag = 'smem constant byte address 0x4 - core index']
  #allocation1 [shape = 'u32[72,128]{1,0:T(1,128)}', space=vmem, size = 0x9000, scoped, tag = 'internal scratch']
  %s0 = inlined_call_operand.hbm [shape: f32[4,3], index: 0, kind: input, shape index: {}]
  %s1 = inlined_call_operand.hbm [shape: f32[2,4,256], index: 1, kind: input, shape index: {}]
  %s2 = inlined_call_operand.hbm [shape: f32[2,4,256], index: 2, kind: input, shape index: {}]
  %s3 = inlined_call_operand.hbm [shape: f32[2,1,256], index: 3, kind: output, shape index: {}]
  %s4 = sld [smem:[#allocation0]]
  $region57: #{tpu_custom_call.1} parent=0
    _
  %s6 = ssub.s32 1, %s4
  %s7 = scalar_select 0, %s6, %s4
  $region1: #{tpu_custom_call.1} parent=0
    #allocation2 [shape = 'u8[2048]{0}', space=vmem, size = 0x800, scoped, tag = 'input window, operand 0, single buffered']
    #allocation3 [shape = 's32[2]{0}', space=sflag, size = 0x8, scoped, tag = 'scoped memory for tpu_custom_call.1']
    #allocation4 [shape = 's32[2]{0}', space=sflag, size = 0x8, scoped, tag = 'scoped memory for tpu_custom_call.1']
    #allocation5 [shape = 'u8[8192]{0}', space=vmem, size = 0x2000, scoped, tag = 'input window, operand 1']
    #allocation6 [shape = 's32[2]{0}', space=sflag, size = 0x8, scoped, tag = 'scoped memory for tpu_custom_call.1']
    #allocation7 [shape = 'u8[8192]{0}', space=vmem, size = 0x2000, scoped, tag = 'input window, operand 2']
    #allocation8 [shape = 'u8[2048]{0}', space=vmem, size = 0x800, scoped, tag = 'output window, operand 0']
    %8 = vsyncpa [#allocation3], 0
    %9 = vsyncpa [#allocation6], 0
    %s10 = scalar_lea.sflag [#allocation6], 1
    %11 = vsyncpa %s10, 0
    %12 = vsyncpa [#allocation4], 0
    %s13 = scalar_lea.sflag [#allocation4], 1
    %14 = vsyncpa %s13, 0
    loop: start=0, step=1, limit=4
    $region2: #{tpu_custom_call.1} parent=1 // loop_pre_header
      _
    $region3: #{tpu_custom_call.1} parent=1 // loop_header
      %s16 = sphi 0, %s20
      %p17 = scmp.ge.s32.totalorder %s16, 4
      %s23 = sphi 0, %s35
      %s24 = sphi 0, %s31
      %s25 = sphi 0, %s23
      %s26 = sphi 0, %s24
      %s27 = sphi 0, %s25
      %s28 = sphi 0, %s26
      %s36 = sphi 0, %s36
      %s38 = sphi 0, %s36
      %s39 = sphi 0, %s38
      %s53 = sphi 0, %s39
      %s61 = sphi 0, %s63
      %s64 = sphi 0, %s61
      %s65 = sphi 0, %s64
      %s81 = sphi 0, %s65
      %s89 = sphi 0, %s91
      %s92 = sphi 0, %s89
      %s93 = sphi 0, %s92
      %s109 = sphi 0, %s93
      %s117 = sphi 0, %s119
      %s120 = sphi 0, %s117
      %s121 = sphi 0, %s120
      %s137 = sphi 0, %s121
    $region4: #{tpu_custom_call.1} parent=1 // loop_header_branch
      %19 = sbr.rel (%p17) target = $region8
    $region5: #{tpu_custom_call.1} parent=1 // loop_body
      %s21 = ssub.s32 %s16, 1
      %s22 = ssub.s32 %s16, 2
      %s29 = sadd.s32 1, %s24
      %p30 = scmp.ge.s32.totalorder %s29, 1
      %s31 = scalar_select %p30, 0, %s29
      %s32 = sadd.s32 1, %s23
      %s33 = scalar_select %p30, %s32, %s23
      %p34 = scmp.ge.s32.totalorder %s33, 2
      %s35 = scalar_select %p34, 0, %s33
      %s37 = sadd.s32 %s36, 1
      %p40 = scmp.eq.s32.totalorder %s16, 1
      %p41 = scmp.ne.s32.totalorder %s36, %s38
      %p42 = scmp.eq.s32.totalorder %s16, 0
      %p43 = por %p41, %p42
      %p44 = scmp.ne.s32.totalorder %s36, %s38
      %p45 = scmp.eq.s32.totalorder %s21, 1
      %p46 = por %p44, %p45
      %p47 = scmp.ne.s32.totalorder %s38, %s39
      %p48 = scmp.eq.s32.totalorder %s21, 0
      %p49 = por %p47, %p48
      %p50 = scmp.ne.s32.totalorder %s38, %s39
      %p51 = scmp.eq.s32.totalorder %s22, 1
      %p52 = por %p50, %p51
      %p54 = scmp.ne.s32.totalorder %s39, %s53
      %p55 = scmp.eq.s32.totalorder %s22, 0
      %p56 = por %p54, %p55
      %s57 = ssub.s32 %s23, %s35
      %s58 = ssub.s32 %s24, %s31
      %s59 = sor.u32 %s57, %s58
      %p60 = scmp.eq.s32.totalorder %s59, 0
      %s62 = sadd.s32 %s61, 1
      %s63 = scalar_select %p60, %s61, %s62
      %p66 = pneg %p60
      %p67 = scmp.eq.s32.totalorder %s16, 1
      %p68 = por %p66, %p67
      %p69 = scmp.ne.s32.totalorder %s61, %s64
      %p70 = scmp.eq.s32.totalorder %s16, 0
      %p71 = por %p69, %p70
      %p72 = scmp.ne.s32.totalorder %s61, %s64
      %p73 = scmp.eq.s32.totalorder %s21, 1
      %p74 = por %p72, %p73
      %p75 = scmp.ne.s32.totalorder %s64, %s65
      %p76 = scmp.eq.s32.totalorder %s21, 0
      %p77 = por %p75, %p76
      %p78 = scmp.ne.s32.totalorder %s64, %s65
      %p79 = scmp.eq.s32.totalorder %s22, 1
      %p80 = por %p78, %p79
      %p82 = scmp.ne.s32.totalorder %s65, %s81
      %p83 = scmp.eq.s32.totalorder %s22, 0
      %p84 = por %p82, %p83
      %s85 = ssub.s32 %s23, %s35
      %s86 = ssub.s32 %s24, %s31
      %s87 = sor.u32 %s85, %s86
      %p88 = scmp.eq.s32.totalorder %s87, 0
      %s90 = sadd.s32 %s89, 1
      %s91 = scalar_select %p88, %s89, %s90
      %p94 = pneg %p88
      %p95 = scmp.eq.s32.totalorder %s16, 1
      %p96 = por %p94, %p95
      %p97 = scmp.ne.s32.totalorder %s89, %s92
      %p98 = scmp.eq.s32.totalorder %s16, 0
      %p99 = por %p97, %p98
      %p100 = scmp.ne.s32.totalorder %s89, %s92
      %p101 = scmp.eq.s32.totalorder %s21, 1
      %p102 = por %p100, %p101
      %p103 = scmp.ne.s32.totalorder %s92, %s93
      %p104 = scmp.eq.s32.totalorder %s21, 0
      %p105 = por %p103, %p104
      %p106 = scmp.ne.s32.totalorder %s92, %s93
      %p107 = scmp.eq.s32.totalorder %s22, 1
      %p108 = por %p106, %p107
      %p110 = scmp.ne.s32.totalorder %s93, %s109
      %p111 = scmp.eq.s32.totalorder %s22, 0
      %p112 = por %p110, %p111
      %s113 = ssub.s32 %s23, %s35
      %s114 = ssub.s32 %s24, %s31
      %s115 = sor.u32 %s113, %s114
      %p116 = scmp.eq.s32.totalorder %s115, 0
      %s118 = sadd.s32 %s117, 1
      %s119 = scalar_select %p116, %s117, %s118
      %p122 = pneg %p116
      %p123 = scmp.eq.s32.totalorder %s16, 1
      %p124 = por %p122, %p123
      %p125 = scmp.ne.s32.totalorder %s117, %s120
      %p126 = scmp.eq.s32.totalorder %s16, 0
      %p127 = por %p125, %p126
      %p128 = scmp.ne.s32.totalorder %s117, %s120
      %p129 = scmp.eq.s32.totalorder %s21, 1
      %p130 = por %p128, %p129
      %p131 = scmp.ne.s32.totalorder %s120, %s121
      %p132 = scmp.eq.s32.totalorder %s21, 0
      %p133 = por %p131, %p132
      %p134 = scmp.ne.s32.totalorder %s120, %s121
      %p135 = scmp.eq.s32.totalorder %s22, 1
      %p136 = por %p134, %p135
      %p138 = scmp.ne.s32.totalorder %s121, %s137
      %p139 = scmp.eq.s32.totalorder %s22, 0
      %p140 = por %p138, %p139
      %p141 = scmp.le.s32.totalorder 1, %s16
      %p142 = scmp.lt.s32.totalorder %s16, 3
      %p143 = pnand %p141, %p142
      %p144 = pneg %p143
      // Predicated region
      $region9: #{tpu_custom_call.1} parent=5 // pred_check
        _
      $region10: #{tpu_custom_call.1} parent=5 // pred_check_branch
        %146 = sbr.rel (%p143) target = $region12
      $region11: #{tpu_custom_call.1} parent=5 // pred_region
        %s147 = ssub.s32 %s16, 1
        // Predicated region
        $region13: #{tpu_custom_call.1} parent=11 // pred_check
          %p148 = pneg %p49
        $region14: #{tpu_custom_call.1} parent=11 // pred_check_branch
          %150 = sbr.rel (%p148) target = $region16
        $region15: #{tpu_custom_call.1} parent=11 // pred_region
          %152 = vsyncadd [#allocation3], 0
          %s154 = sshll.u32 %s0, 4
          %s155 = int_to_ptr.hbm [resolvable:$true] %s154
          %s156 = sshll.u32 [#allocation2], 4
          %s157 = int_to_ptr.vmem [resolvable:$true] %s156
          %159 = dma.hbm_to_vmem [thread:$0]  %s155, 64, %s157, [#allocation3]
        $region16: #{tpu_custom_call.1} parent=11 // pred_fallthru
          _
      $region12: #{tpu_custom_call.1} parent=5 // pred_fallthru
        _
      %p160 = scmp.lt.s32.totalorder %s16, 2
      // Predicated region
      $region17: #{tpu_custom_call.1} parent=5 // pred_check
        %p161 = pneg %p160
      $region18: #{tpu_custom_call.1} parent=5 // pred_check_branch
        %163 = sbr.rel (%p161) target = $region20
      $region19: #{tpu_custom_call.1} parent=5 // pred_region
        // Predicated region
        $region21: #{tpu_custom_call.1} parent=19 // pred_check
          %p164 = pneg %p71
        $region22: #{tpu_custom_call.1} parent=19 // pred_check_branch
          %166 = sbr.rel (%p164) target = $region24
        $region23: #{tpu_custom_call.1} parent=19 // pred_region
          %s167 = sand.u32 %s16, 1
          %s168 = scalar_lea.sflag [#allocation6], %s167
          %s169 = sand.u32 %s61, 1
          %s170 = smul.addr %s169, 8
          %s171 = scalar_lea.vmem [#allocation5], %s170
          %s172 = smul.u32 2, %s24
          %174 = vsyncadd %s168, 0
          %s175 = smul.addr %s23, 2
          %s176 = sadd.s32 %s172, %s175
          %s177 = smul.addr %s176, 4
          %s178 = scalar_lea.hbm %s1, %s177
          %s180 = sshll.u32 %s178, 4
          %s181 = int_to_ptr.hbm [resolvable:$true] %s180
          %s182 = sshll.u32 %s171, 4
          %s183 = int_to_ptr.vmem [resolvable:$true] %s182
          %185 = dma.hbm_to_vmem [thread:$0]  %s181, 128, %s183, %s168
        $region24: #{tpu_custom_call.1} parent=19 // pred_fallthru
          _
        // Predicated region
        $region25: #{tpu_custom_call.1} parent=19 // pred_check
          %p186 = pneg %p99
        $region26: #{tpu_custom_call.1} parent=19 // pred_check_branch
          %188 = sbr.rel (%p186) target = $region28
        $region27: #{tpu_custom_call.1} parent=19 // pred_region
          %s189 = sand.u32 %s16, 1
          %s190 = scalar_lea.sflag [#allocation6], %s189
          %s191 = sand.u32 %s89, 1
          %s192 = smul.addr %s191, 8
          %s193 = scalar_lea.vmem [#allocation7], %s192
          %s194 = smul.u32 2, %s24
          %196 = vsyncadd %s190, 0
          %s197 = smul.addr %s23, 2
          %s198 = sadd.s32 %s194, %s197
          %s199 = smul.addr %s198, 4
          %s200 = scalar_lea.hbm %s2, %s199
          %s202 = sshll.u32 %s200, 4
          %s203 = int_to_ptr.hbm [resolvable:$true] %s202
          %s204 = sshll.u32 %s193, 4
          %s205 = int_to_ptr.vmem [resolvable:$true] %s204
          %207 = dma.hbm_to_vmem [thread:$0]  %s203, 128, %s205, %s190
        $region28: #{tpu_custom_call.1} parent=19 // pred_fallthru
          _
      $region20: #{tpu_custom_call.1} parent=5 // pred_fallthru
        _
      %p208 = scmp.le.s32.totalorder 1, %s16
      %p209 = scmp.lt.s32.totalorder %s16, 3
      %p210 = pnand %p208, %p209
      %p211 = pneg %p210
      // Predicated region
      $region29: #{tpu_custom_call.1} parent=5 // pred_check
        _
      $region30: #{tpu_custom_call.1} parent=5 // pred_check_branch
        %213 = sbr.rel (%p210) target = $region32
      $region31: #{tpu_custom_call.1} parent=5 // pred_region
        %s214 = ssub.s32 %s16, 1
        // Predicated region
        $region33: #{tpu_custom_call.1} parent=31 // pred_check
          %p215 = pneg %p49
        $region34: #{tpu_custom_call.1} parent=31 // pred_check_branch
          %217 = sbr.rel (%p215) target = $region36
        $region35: #{tpu_custom_call.1} parent=31 // pred_region
          %219 = dma.done [#allocation3], 64
        $region36: #{tpu_custom_call.1} parent=31 // pred_fallthru
          _
        %s220 = sand.u32 %s21, 1
        %s221 = scalar_lea.sflag [#allocation6], %s220
        %s222 = sand.u32 %s64, 1
        %s223 = smul.addr %s222, 8
        %s224 = scalar_lea.vmem [#allocation5], %s223
        // Predicated region
        $region37: #{tpu_custom_call.1} parent=31 // pred_check
          %p225 = pneg %p77
        $region38: #{tpu_custom_call.1} parent=31 // pred_check_branch
          %227 = sbr.rel (%p225) target = $region40
        $region39: #{tpu_custom_call.1} parent=31 // pred_region
          %229 = dma.done %s221, 128
        $region40: #{tpu_custom_call.1} parent=31 // pred_fallthru
          _
        %s230 = sand.u32 %s21, 1
        %s231 = scalar_lea.sflag [#allocation6], %s230
        %s232 = sand.u32 %s92, 1
        %s233 = smul.addr %s232, 8
        %s234 = scalar_lea.vmem [#allocation7], %s233
        // Predicated region
        $region41: #{tpu_custom_call.1} parent=31 // pred_check
          %p235 = pneg %p105
        $region42: #{tpu_custom_call.1} parent=31 // pred_check_branch
          %237 = sbr.rel (%p235) target = $region44
        $region43: #{tpu_custom_call.1} parent=31 // pred_region
          %239 = dma.done %s231, 128
        $region44: #{tpu_custom_call.1} parent=31 // pred_fallthru
          _
        %p240 = pneg %p49
        %p241 = pneg %p46
        %s242 = sand.u32 %s21, 1
        %s243 = scalar_lea.sflag [#allocation6], %s242
        %s244 = sand.u32 %s64, 1
        %s245 = smul.addr %s244, 8
        %s246 = scalar_lea.vmem [#allocation5], %s245
        %p247 = pneg %p77
        %p248 = pneg %p74
        %s249 = sand.u32 %s21, 1
        %s250 = scalar_lea.sflag [#allocation6], %s249
        %s251 = sand.u32 %s92, 1
        %s252 = smul.addr %s251, 8
        %s253 = scalar_lea.vmem [#allocation7], %s252
        %p254 = pneg %p105
        %p255 = pneg %p102
        %p256 = pneg %p133
        %p257 = pneg %p130
        %s258 = sand.u32 %s120, 1
        %s259 = scalar_lea.sflag [#allocation4], %s258
        %s260 = sand.u32 %s120, 1
        %s261 = smul.addr %s260, 2
        %s262 = scalar_lea.vmem [#allocation8], %s261
        %s263 = smul.u32 2, %s26
        %s264 = smul.u32 2, %s26
        %s265 = smul.u32 2, %s26
        %v266 = vld [vmem:[#allocation2] sm:$0xf]
        %v267 = vld [vmem:[%s224] sm:$0xff]
        %v268 = vld [vmem:[%s234] sm:$0xff]
        %270 = vset.pattern.permute.xlu0 0
        %271 = vperm.xlu0 %270, %v266
        %v272 = vpop.permute.xlu0 %271
        %275 = vst [vmem:[#allocation1] ss:$2 sm:$0xff] %v267
        %v276 = vld.sshfl [vmem:[#allocation1] sm:$0xff pattern:$0x75316420]
        %v277 = vld.sshfl [vmem:[#allocation1 + $0x8] sm:$0xff pattern:$0x75316420]
        %v280 = vmul.f32 %v272, %v276
        %v281 = vmul.f32 %v272, %v277
        %282 = vset.pattern.permute.xlu0 1
        %283 = vperm.xlu0 %282, %v266
        %v284 = vpop.permute.xlu0 %283
        %287 = vst [vmem:[#allocation1] ss:$2 sm:$0xff] %v268
        %v288 = vld.sshfl [vmem:[#allocation1] sm:$0xff pattern:$0x75316420]
        %v289 = vld.sshfl [vmem:[#allocation1 + $0x8] sm:$0xff pattern:$0x75316420]
        %v292 = vmul.f32 %v284, %v288
        %v293 = vmul.f32 %v284, %v289
        %v294 = vadd.f32 %v280, %v292
        %v295 = vadd.f32 %v281, %v293
        %vm296 = vcmask 1043456
        %v297 = vsel %vm296, %v294, 0.0
        %v298 = vrot.slane %v297, 4
        %v299 = vadd.f32 %v297, %v298
        %v300 = vrot.slane %v299, 2
        %v301 = vadd.f32 %v299, %v300
        %v302 = vrot.slane %v301, 1
        %v303 = vadd.f32 %v301, %v302
        %v304 = vsel %vm296, %v295, 0.0
        %v305 = vrot.slane %v304, 4
        %v306 = vadd.f32 %v304, %v305
        %v307 = vrot.slane %v306, 2
        %v308 = vadd.f32 %v306, %v307
        %v309 = vrot.slane %v308, 1
        %v310 = vadd.f32 %v308, %v309
        %311 = vset.pattern.permute.xlu0 2
        %312 = vperm.xlu0 %311, %v266
        %v313 = vpop.permute.xlu0 %312
        %v315 = vadd.f32 %v303, %v313
        %v316 = vadd.f32 %v310, %v313
        %v319 = vrot.slane %v316, 7
        %vm320 = vcmask 1040384
        %v321 = vsel %vm320, %v315, %v319
        %v323 = vlaneseq
        %vm324 = vcmp.ge.s32.totalorder %v323, 0
        %vm325 = vcmp.lt.s32.totalorder %v323, 256
        %vm326 = vmand %vm324, %vm325
        %327 = vst.msk [vmem:[%s262] sm:$0x3] %vm326, %v321
        %s328 = sand.u32 %s120, 1
        %s329 = scalar_lea.sflag [#allocation4], %s328
        %s330 = sand.u32 %s120, 1
        %s331 = smul.addr %s330, 2
        %s332 = scalar_lea.vmem [#allocation8], %s331
        // Predicated region
        $region45: #{tpu_custom_call.1} parent=31 // pred_check
          %p333 = pneg %p130
        $region46: #{tpu_custom_call.1} parent=31 // pred_check_branch
          %335 = sbr.rel (%p333) target = $region48
        $region47: #{tpu_custom_call.1} parent=31 // pred_region
          %s336 = smul.u32 2, %s26
          %338 = vsyncadd %s329, 0
          %s339 = smul.addr %s25, 2
          %s340 = sadd.s32 %s336, %s339
          %s341 = scalar_lea.hbm %s3, %s340
          %s343 = sshll.u32 %s332, 4
          %s344 = int_to_ptr.vmem [resolvable:$true] %s343
          %s345 = sshll.u32 %s341, 4
          %s346 = int_to_ptr.hbm [resolvable:$true] %s345
          %348 = dma.vmem_to_hbm [thread:$0]  %s344, 32, %s346, %s329
        $region48: #{tpu_custom_call.1} parent=31 // pred_fallthru
          _
      $region32: #{tpu_custom_call.1} parent=5 // pred_fallthru
        _
      %p349 = scmp.le.s32.totalorder 2, %s16
      // Predicated region
      $region49: #{tpu_custom_call.1} parent=5 // pred_check
        %p350 = pneg %p349
      $region50: #{tpu_custom_call.1} parent=5 // pred_check_branch
        %352 = sbr.rel (%p350) target = $region52
      $region51: #{tpu_custom_call.1} parent=5 // pred_region
        %s353 = ssub.s32 %s16, 2
        // Predicated region
        $region53: #{tpu_custom_call.1} parent=51 // pred_check
          %p354 = pneg %p136
        $region54: #{tpu_custom_call.1} parent=51 // pred_check_branch
          %356 = sbr.rel (%p354) target = $region56
        $region55: #{tpu_custom_call.1} parent=51 // pred_region
          %s357 = sand.u32 %s121, 1
          %s358 = scalar_lea.sflag [#allocation4], %s357
          %s359 = sand.u32 %s121, 1
          %s360 = smul.addr %s359, 2
          %s361 = scalar_lea.vmem [#allocation8], %s360
          %363 = dma.done %s358, 32
        $region56: #{tpu_custom_call.1} parent=51 // pred_fallthru
          _
      $region52: #{tpu_custom_call.1} parent=5 // pred_fallthru
        _
    $region6: #{tpu_custom_call.1} parent=1 // loop_footer
      %s20 = sadd.s32 1, %s16
    $region7: #{tpu_custom_call.1} parent=1 // loop_footer_branch
      %15 = sbr.rel target = $region3
    $region8: #{tpu_custom_call.1} parent=1 // loop_exit
      _
    %364 = vsyncpa [#allocation3], 1
    %s365 = scalar_lea.sflag [#allocation3], 1
    %366 = vsyncpa %s365, 1
    %367 = vsyncpa [#allocation6], 1
    %s368 = scalar_lea.sflag [#allocation6], 1
    %369 = vsyncpa %s368, 1
    %370 = vsyncpa [#allocation4], 1
    %s371 = scalar_lea.sflag [#allocation4], 1
    %372 = vsyncpa %s371, 1

</llo_original>
